<compile_context>
chip_gen: v5e
topology: v5e:2x2
jax: 0.10.0
libtpu: 0.0.40
codegen_flags: <defaults>
</compile_context>

<pallas_src>
import math
import functools

import jax
import jax.numpy as jnp
from jax.experimental import pallas as pl
from jax.experimental.pallas import tpu as pltpu


def _flash_mha_kernel(q_ref, k_ref, v_ref, o_ref, m_sc, l_sc, acc_sc,
                      *, scale, heads):
    # Blocks: q_ref [1, H, tq, c_m], k_ref/v_ref [1, H, tk, c_m],
    #         o_ref [1, tq, H, c_m] (head-contiguous in HBM).
    ki = pl.program_id(2)

    @pl.when(ki == 0)
    def _init():
        m_sc[...] = jnp.full(m_sc.shape, -jnp.inf, dtype=m_sc.dtype)
        l_sc[...] = jnp.zeros(l_sc.shape, dtype=l_sc.dtype)
        acc_sc[...] = jnp.zeros(acc_sc.shape, dtype=acc_sc.dtype)

    q = q_ref[0]          # [H, tq, c_m]   (operand dtype = caller dtype)
    k = k_ref[0]          # [H, tk, c_m]
    v = v_ref[0]          # [H, tk, c_m]

    # Scores: contract last axes directly (no .T), f32 accumulation on MXU.
    s = jnp.einsum('hqc,hkc->hqk', q, k,
                   preferred_element_type=jnp.float32) * scale   # [H, tq, tk]

    # Online softmax update (all math in f32).
    m_prev = m_sc[...]                                           # [H, tq, 1]
    m_new = jnp.maximum(m_prev, jnp.max(s, axis=-1, keepdims=True))
    alpha = jnp.exp(m_prev - m_new)
    p = jnp.exp(s - m_new)                                       # [H, tq, tk]

    l_sc[...] = alpha * l_sc[...] + jnp.sum(p, axis=-1, keepdims=True)
    acc_sc[...] = alpha * acc_sc[...] + jnp.einsum(
        'hqk,hkc->hqc', p.astype(v.dtype), v,
        preferred_element_type=jnp.float32)
    m_sc[...] = m_new

    @pl.when(ki == pl.num_programs(2) - 1)
    def _finalize():
        # Normalization deferred to finalize (one divide per output element).
        inv_l = pl.reciprocal(l_sc[...], approx=False)           # [H, tq, 1]
        for h in range(heads):                                   # static unroll
            o_ref[0, :, h, :] = (acc_sc[h] * inv_l[h]).astype(o_ref.dtype)
    # TODO(synk): bidirectional=True branch (softmax over dim=-2 and the second
    # einsum back onto the projected queries) is not implemented.


def _pick_block(n, cap):
    """Largest divisor of n that is <= cap, preferring sublane-aligned (x8)."""
    cap = max(1, min(cap, n))
    for d in range(cap, 0, -1):
        if n % d == 0 and (d % 8 == 0 or d == n):
            return d
    for d in range(cap, 0, -1):
        if n % d == 0:
            return d
    return n


def multi_head_attention(q, k, v, params, heads, *, block_q=128, block_k=512):
    """q: [B,Q,q_dim], k: [B,K,k_dim], v: [B,K,v_dim] -> [B,Q,m_dim]."""
    if k is None:
        k = q
    if v is None:
        v = k
    B, Q, q_dim = q.shape
    _, K, k_dim = k.shape
    _, _, v_dim = v.shape
    assert q_dim % heads == 0 and k_dim % heads == 0 and v_dim % heads == 0
    c_q, c_k, c_v = q_dim // heads, k_dim // heads, v_dim // heads

    wq, bq, wk, bk, wv, bv = params
    c_m = wq.shape[1]
    dtype = q.dtype

    # --- Projections hoisted out of the attention kernel: one fused XLA GEMM
    # per projection over all (batch, seq, head) rows, bias folded in.  Output
    # is produced directly in head-major [B, H, S, c_m] layout, so the
    # attention kernel needs no wrapper-side transposes of its inputs.
    def project(x, s_len, c_in, w, b):
        x4 = x.reshape(B, s_len, heads, c_in)
        y = jnp.einsum('bshc,cm->bhsm', x4, w,
                       preferred_element_type=jnp.float32) + b
        return y.astype(dtype)

    qp = project(q, Q, c_q, wq, bq)
    kp = project(k, K, c_k, wk, bk)
    vp = project(v, K, c_v, wv, bv)

    tq = _pick_block(Q, block_q)
    tk = _pick_block(K, block_k)
    grid = (B, Q // tq, K // tk)
    scale = 1.0 / math.sqrt(c_m)

    kernel = functools.partial(_flash_mha_kernel, scale=scale, heads=heads)

    out = pl.pallas_call(
        kernel,
        out_shape=jax.ShapeDtypeStruct((B, Q, heads, c_m), dtype),
        grid_spec=pltpu.PrefetchScalarGridSpec(
            num_scalar_prefetch=0,
            grid=grid,
            in_specs=[
                pl.BlockSpec((1, heads, tq, c_m), lambda b, qi, ki: (b, 0, qi, 0)),
                pl.BlockSpec((1, heads, tk, c_m), lambda b, qi, ki: (b, 0, ki, 0)),
                pl.BlockSpec((1, heads, tk, c_m), lambda b, qi, ki: (b, 0, ki, 0)),
            ],
            out_specs=pl.BlockSpec((1, tq, heads, c_m),
                                   lambda b, qi, ki: (b, qi, 0, 0)),
            scratch_shapes=[
                pltpu.VMEM((heads, tq, 1), jnp.float32),     # running max
                pltpu.VMEM((heads, tq, 1), jnp.float32),     # running denom
                pltpu.VMEM((heads, tq, c_m), jnp.float32),   # output accumulator
            ],
        ),
        compiler_params=pltpu.CompilerParams(
            dimension_semantics=("parallel", "parallel", "arbitrary"),
            vmem_limit_bytes=32 * 1024 * 1024,
        ),
    )(qp, kp, vp)

    # Heads were written contiguously -> merging them is a free reshape.
    return out.reshape(B, Q, heads * c_m)


def _init_linear(key, fan_in, fan_out):
    # Deterministic init mimicking nn.Linear (uniform in +-1/sqrt(fan_in)).
    kw, kb = jax.random.split(key)
    bound = 1.0 / math.sqrt(fan_in)
    w = jax.random.uniform(kw, (fan_in, fan_out), jnp.float32, -bound, bound)
    b = jax.random.uniform(kb, (fan_out,), jnp.float32, -bound, bound)
    return w, b


def _reference(q, k, v, params, heads):
    wq, bq, wk, bk, wv, bv = params
    B, Q, q_dim = q.shape
    _, K, k_dim = k.shape
    _, _, v_dim = v.shape
    qh = q.reshape(B, Q, heads, q_dim // heads).transpose(0, 2, 1, 3)
    kh = k.reshape(B, K, heads, k_dim // heads).transpose(0, 2, 1, 3)
    vh = v.reshape(B, K, heads, v_dim // heads).transpose(0, 2, 1, 3)
    qp = qh @ wq + bq
    kp = kh @ wk + bk
    vp = vh @ wv + bv
    a = jnp.einsum('bhqc,bhkc->bhqk', qp, kp) / math.sqrt(kp.shape[-1])
    a = jax.nn.softmax(a, axis=-1)
    o = jnp.einsum('bhqk,bhkc->bhqc', a, vp)
    return o.transpose(0, 2, 1, 3).reshape(B, Q, -1)


if __name__ == "__main__":
    # Small, divisibility-respecting shapes: q_dim=k_dim=v_dim=m_dim=32, heads=4.
    B, S, q_dim, heads = 2, 8, 32, 4
    m_dim = q_dim
    c = q_dim // heads
    c_m = m_dim // heads

    key = jax.random.PRNGKey(0)
    kx, kq, kk, kv = jax.random.split(key, 4)
    x = jax.random.normal(kx, (B, S, q_dim), jnp.float32)

    wq, bq = _init_linear(kq, c, c_m)
    wk, bk = _init_linear(kk, c, c_m)
    wv, bv = _init_linear(kv, c, c_m)
    params = (wq, bq, wk, bk, wv, bv)

    # Self-attention: k = q.clone(), v = k.clone() as in the module defaults.
    fwd = jax.jit(functools.partial(multi_head_attention, heads=heads))
    out = fwd(x, x, x, params)
    out = jax.block_until_ready(out)

    ref = _reference(x, x, x, params, heads)
    assert out.shape == (B, S, m_dim)
    assert jnp.allclose(out, ref, atol=1e-4, rtol=1e-4), \
        float(jnp.max(jnp.abs(out - ref)))

    print("KERNEL_OK")
</pallas_src>

<mosaic_0001>
module attributes {stable_mosaic.version = 11 : i64} {
  func.func @_flash_mha_kernel(%arg0: i32, %arg1: i32, %arg2: i32, %arg3: memref<1x4x8x8xf32, #tpu.memory_space<vmem>>, %arg4: memref<1x4x8x8xf32, #tpu.memory_space<vmem>>, %arg5: memref<1x4x8x8xf32, #tpu.memory_space<vmem>>, %arg6: memref<1x8x4x8xf32, #tpu.memory_space<vmem>>, %arg7: memref<4x8x1xf32, #tpu.memory_space<vmem>>, %arg8: memref<4x8x1xf32, #tpu.memory_space<vmem>>, %arg9: memref<4x8x8xf32, #tpu.memory_space<vmem>>) attributes {dimension_semantics = [#tpu.dimension_semantics<parallel>, #tpu.dimension_semantics<parallel>, #tpu.dimension_semantics<arbitrary>], iteration_bounds = array<i64: 2, 1, 1>, scalar_prefetch = 0 : i64, scratch_operands = 3 : i64, tpu.core_type = #tpu.core_type<tc>, window_params = [{transform_indices = @transform_0, window_bounds = array<i64: 1, 4, 8, 8>}, {transform_indices = @transform_1, window_bounds = array<i64: 1, 4, 8, 8>}, {transform_indices = @transform_2, window_bounds = array<i64: 1, 4, 8, 8>}, {transform_indices = @transform_3, window_bounds = array<i64: 1, 8, 4, 8>}]} {
    %c0_i32 = arith.constant 0 : i32
    %0 = arith.cmpi eq, %arg2, %c0_i32 : i32
    %1 = arith.extui %0 : i1 to i32
    %c0_i32_0 = arith.constant 0 : i32
    %2 = arith.cmpi ne, %1, %c0_i32_0 : i32
    scf.if %2 {
      %cst_36 = arith.constant 0xFF800000 : f32
      %37 = vector.broadcast %cst_36 : f32 to vector<4x8x1xf32>
      %c0_37 = arith.constant 0 : index
      %c0_38 = arith.constant 0 : index
      %c0_39 = arith.constant 0 : index
      %38 = vector.load %arg7[%c0_37, %c0_38, %c0_39] : memref<4x8x1xf32, #tpu.memory_space<vmem>>, vector<4x8x1xf32>
      tpu.vector_store %arg7[%c0_37, %c0_38, %c0_39], %37 {strides = array<i32>} : memref<4x8x1xf32, #tpu.memory_space<vmem>>, vector<4x8x1xf32>,
      %cst_40 = arith.constant 0.000000e+00 : f32
      %39 = vector.broadcast %cst_40 : f32 to vector<4x8x1xf32>
      %c0_41 = arith.constant 0 : index
      %c0_42 = arith.constant 0 : index
      %c0_43 = arith.constant 0 : index
      %40 = vector.load %arg8[%c0_41, %c0_42, %c0_43] : memref<4x8x1xf32, #tpu.memory_space<vmem>>, vector<4x8x1xf32>
      tpu.vector_store %arg8[%c0_41, %c0_42, %c0_43], %39 {strides = array<i32>} : memref<4x8x1xf32, #tpu.memory_space<vmem>>, vector<4x8x1xf32>,
      %cst_44 = arith.constant 0.000000e+00 : f32
      %41 = vector.broadcast %cst_44 : f32 to vector<4x8x8xf32>
      %c0_45 = arith.constant 0 : index
      %c0_46 = arith.constant 0 : index
      %c0_47 = arith.constant 0 : index
      %42 = vector.load %arg9[%c0_45, %c0_46, %c0_47] : memref<4x8x8xf32, #tpu.memory_space<vmem>>, vector<4x8x8xf32>
      tpu.vector_store %arg9[%c0_45, %c0_46, %c0_47], %41 {strides = array<i32>} : memref<4x8x8xf32, #tpu.memory_space<vmem>>, vector<4x8x8xf32>,
    } else {
    }
    %c0 = arith.constant 0 : index
    %c0_1 = arith.constant 0 : index
    %c0_2 = arith.constant 0 : index
    %c0_3 = arith.constant 0 : index
    %3 = vector.load %arg3[%c0, %c0_1, %c0_2, %c0_3] : memref<1x4x8x8xf32, #tpu.memory_space<vmem>>, vector<1x4x8x8xf32>
    %4 = vector.shape_cast %3 : vector<1x4x8x8xf32> to vector<4x8x8xf32>
    %c0_4 = arith.constant 0 : index
    %c0_5 = arith.constant 0 : index
    %c0_6 = arith.constant 0 : index
    %c0_7 = arith.constant 0 : index
    %5 = vector.load %arg4[%c0_4, %c0_5, %c0_6, %c0_7] : memref<1x4x8x8xf32, #tpu.memory_space<vmem>>, vector<1x4x8x8xf32>
    %6 = vector.shape_cast %5 : vector<1x4x8x8xf32> to vector<4x8x8xf32>
    %c0_8 = arith.constant 0 : index
    %c0_9 = arith.constant 0 : index
    %c0_10 = arith.constant 0 : index
    %c0_11 = arith.constant 0 : index
    %7 = vector.load %arg5[%c0_8, %c0_9, %c0_10, %c0_11] : memref<1x4x8x8xf32, #tpu.memory_space<vmem>>, vector<1x4x8x8xf32>
    %8 = vector.shape_cast %7 : vector<1x4x8x8xf32> to vector<4x8x8xf32>
    "tpu.trace_start"() <{level = 10 : i32, message = "hqc,hkc->hqk"}> : () -> ()
    %cst = arith.constant dense<0.000000e+00> : vector<4x8x8xf32>
    %9 = tpu.matmul %4, %6, %cst {dimension_numbers = #tpu.dot_dimension_numbers<[2], [2], [1], [1], [0, 0, 0, 1, 1, 1], [0], [0]>} : vector<4x8x8xf32>, vector<4x8x8xf32>, vector<4x8x8xf32> -> vector<4x8x8xf32>
    "tpu.trace_stop"() : () -> ()
    %cst_12 = arith.constant 0.353553385 : f32
    %10 = vector.broadcast %cst_12 : f32 to vector<4x8x8xf32>
    %11 = arith.mulf %9, %10 : vector<4x8x8xf32>
    %c0_13 = arith.constant 0 : index
    %c0_14 = arith.constant 0 : index
    %c0_15 = arith.constant 0 : index
    %12 = vector.load %arg7[%c0_13, %c0_14, %c0_15] : memref<4x8x1xf32, #tpu.memory_space<vmem>>, vector<4x8x1xf32>
    %cst_16 = arith.constant dense<0xFF800000> : vector<4x8xf32>
    %13 = vector.multi_reduction <maximumf>, %11, %cst_16 [2] : vector<4x8x8xf32> to vector<4x8xf32>
    %14 = vector.shape_cast %13 : vector<4x8xf32> to vector<4x8x1xf32>
    %15 = arith.maximumf %12, %14 : vector<4x8x1xf32>
    %16 = arith.subf %12, %15 : vector<4x8x1xf32>
    %17 = math.exp %16 : vector<4x8x1xf32>
    %18 = vector.broadcast %15 : vector<4x8x1xf32> to vector<4x8x8xf32>
    %19 = arith.subf %11, %18 : vector<4x8x8xf32>
    %20 = math.exp %19 : vector<4x8x8xf32>
    %c0_17 = arith.constant 0 : index
    %c0_18 = arith.constant 0 : index
    %c0_19 = arith.constant 0 : index
    %21 = vector.load %arg8[%c0_17, %c0_18, %c0_19] : memref<4x8x1xf32, #tpu.memory_space<vmem>>, vector<4x8x1xf32>
    %22 = arith.mulf %17, %21 : vector<4x8x1xf32>
    %cst_20 = arith.constant dense<0.000000e+00> : vector<4x8xf32>
    %23 = vector.multi_reduction <add>, %20, %cst_20 [2] : vector<4x8x8xf32> to vector<4x8xf32>
    %24 = vector.shape_cast %23 : vector<4x8xf32> to vector<4x8x1xf32>
    %25 = arith.addf %22, %24 : vector<4x8x1xf32>
    %c0_21 = arith.constant 0 : index
    %c0_22 = arith.constant 0 : index
    %c0_23 = arith.constant 0 : index
    %26 = vector.load %arg8[%c0_21, %c0_22, %c0_23] : memref<4x8x1xf32, #tpu.memory_space<vmem>>, vector<4x8x1xf32>
    tpu.vector_store %arg8[%c0_21, %c0_22, %c0_23], %25 {strides = array<i32>} : memref<4x8x1xf32, #tpu.memory_space<vmem>>, vector<4x8x1xf32>,
    %c0_24 = arith.constant 0 : index
    %c0_25 = arith.constant 0 : index
    %c0_26 = arith.constant 0 : index
    %27 = vector.load %arg9[%c0_24, %c0_25, %c0_26] : memref<4x8x8xf32, #tpu.memory_space<vmem>>, vector<4x8x8xf32>
    %28 = vector.broadcast %17 : vector<4x8x1xf32> to vector<4x8x8xf32>
    %29 = arith.mulf %28, %27 : vector<4x8x8xf32>
    "tpu.trace_start"() <{level = 10 : i32, message = "hqk,hkc->hqc"}> : () -> ()
    %cst_27 = arith.constant dense<0.000000e+00> : vector<4x8x8xf32>
    %30 = tpu.matmul %20, %8, %cst_27 {dimension_numbers = #tpu.dot_dimension_numbers<[2], [1], [1], [2], [0, 0, 0, 1, 1, 2], [0], [0]>} : vector<4x8x8xf32>, vector<4x8x8xf32>, vector<4x8x8xf32> -> vector<4x8x8xf32>
    "tpu.trace_stop"() : () -> ()
    %31 = arith.addf %29, %30 : vector<4x8x8xf32>
    %c0_28 = arith.constant 0 : index
    %c0_29 = arith.constant 0 : index
    %c0_30 = arith.constant 0 : index
    %32 = vector.load %arg9[%c0_28, %c0_29, %c0_30] : memref<4x8x8xf32, #tpu.memory_space<vmem>>, vector<4x8x8xf32>
    tpu.vector_store %arg9[%c0_28, %c0_29, %c0_30], %31 {strides = array<i32>} : memref<4x8x8xf32, #tpu.memory_space<vmem>>, vector<4x8x8xf32>,
    %c0_31 = arith.constant 0 : index
    %c0_32 = arith.constant 0 : index
    %c0_33 = arith.constant 0 : index
    %33 = vector.load %arg7[%c0_31, %c0_32, %c0_33] : memref<4x8x1xf32, #tpu.memory_space<vmem>>, vector<4x8x1xf32>
    tpu.vector_store %arg7[%c0_31, %c0_32, %c0_33], %15 {strides = array<i32>} : memref<4x8x1xf32, #tpu.memory_space<vmem>>, vector<4x8x1xf32>,
    %c0_i32_34 = arith.constant 0 : i32
    %34 = arith.cmpi eq, %arg2, %c0_i32_34 : i32
    %35 = arith.extui %34 : i1 to i32
    %c0_i32_35 = arith.constant 0 : i32
    %36 = arith.cmpi ne, %35, %c0_i32_35 : i32
    scf.if %36 {
      %c0_36 = arith.constant 0 : index
      %c0_37 = arith.constant 0 : index
      %c0_38 = arith.constant 0 : index
      %37 = vector.load %arg8[%c0_36, %c0_37, %c0_38] : memref<4x8x1xf32, #tpu.memory_space<vmem>>, vector<4x8x1xf32>
      %38 = tpu.reciprocal %37 : vector<4x8x1xf32> -> vector<4x8x1xf32>
      %c0_39 = arith.constant 0 : index
      %c0_40 = arith.constant 0 : index
      %c0_41 = arith.constant 0 : index
      %39 = vector.load %arg9[%c0_39, %c0_40, %c0_41] : memref<4x8x8xf32, #tpu.memory_space<vmem>>, vector<1x8x8xf32>
      %40 = vector.shape_cast %39 : vector<1x8x8xf32> to vector<8x8xf32>
      %41 = vector.extract_strided_slice %38 {offsets = [0, 0, 0], sizes = [1, 8, 1], strides = [1, 1, 1]} : vector<4x8x1xf32> to vector<1x8x1xf32>
      %42 = vector.shape_cast %41 : vector<1x8x1xf32> to vector<8x1xf32>
      %43 = vector.broadcast %42 : vector<8x1xf32> to vector<8x8xf32>
      %44 = arith.mulf %40, %43 : vector<8x8xf32>
      %c0_42 = arith.constant 0 : index
      %c0_43 = arith.constant 0 : index
      %c0_44 = arith.constant 0 : index
      %c0_45 = arith.constant 0 : index
      %45 = vector.load %arg6[%c0_42, %c0_43, %c0_44, %c0_45] : memref<1x8x4x8xf32, #tpu.memory_space<vmem>>, vector<1x8x1x8xf32>
      %46 = vector.shape_cast %45 : vector<1x8x1x8xf32> to vector<8x8xf32>
      %47 = vector.shape_cast %44 : vector<8x8xf32> to vector<1x8x1x8xf32>
      tpu.vector_store %arg6[%c0_42, %c0_43, %c0_44, %c0_45], %47 {strides = array<i32>} : memref<1x8x4x8xf32, #tpu.memory_space<vmem>>, vector<1x8x1x8xf32>,
      %c1 = arith.constant 1 : index
      %c0_46 = arith.constant 0 : index
      %c0_47 = arith.constant 0 : index
      %48 = vector.load %arg9[%c1, %c0_46, %c0_47] : memref<4x8x8xf32, #tpu.memory_space<vmem>>, vector<1x8x8xf32>
      %49 = vector.shape_cast %48 : vector<1x8x8xf32> to vector<8x8xf32>
      %50 = vector.extract_strided_slice %38 {offsets = [1, 0, 0], sizes = [1, 8, 1], strides = [1, 1, 1]} : vector<4x8x1xf32> to vector<1x8x1xf32>
      %51 = vector.shape_cast %50 : vector<1x8x1xf32> to vector<8x1xf32>
      %52 = vector.broadcast %51 : vector<8x1xf32> to vector<8x8xf32>
      %53 = arith.mulf %49, %52 : vector<8x8xf32>
      %c0_48 = arith.constant 0 : index
      %c0_49 = arith.constant 0 : index
      %c1_50 = arith.constant 1 : index
      %c0_51 = arith.constant 0 : index
      %54 = vector.load %arg6[%c0_48, %c0_49, %c1_50, %c0_51] : memref<1x8x4x8xf32, #tpu.memory_space<vmem>>, vector<1x8x1x8xf32>
      %55 = vector.shape_cast %54 : vector<1x8x1x8xf32> to vector<8x8xf32>
      %56 = vector.shape_cast %53 : vector<8x8xf32> to vector<1x8x1x8xf32>
      tpu.vector_store %arg6[%c0_48, %c0_49, %c1_50, %c0_51], %56 {strides = array<i32>} : memref<1x8x4x8xf32, #tpu.memory_space<vmem>>, vector<1x8x1x8xf32>,
      %c2 = arith.constant 2 : index
      %c0_52 = arith.constant 0 : index
      %c0_53 = arith.constant 0 : index
      %57 = vector.load %arg9[%c2, %c0_52, %c0_53] : memref<4x8x8xf32, #tpu.memory_space<vmem>>, vector<1x8x8xf32>
      %58 = vector.shape_cast %57 : vector<1x8x8xf32> to vector<8x8xf32>
      %59 = vector.extract_strided_slice %38 {offsets = [2, 0, 0], sizes = [1, 8, 1], strides = [1, 1, 1]} : vector<4x8x1xf32> to vector<1x8x1xf32>
      %60 = vector.shape_cast %59 : vector<1x8x1xf32> to vector<8x1xf32>
      %61 = vector.broadcast %60 : vector<8x1xf32> to vector<8x8xf32>
      %62 = arith.mulf %58, %61 : vector<8x8xf32>
      %c0_54 = arith.constant 0 : index
      %c0_55 = arith.constant 0 : index
      %c2_56 = arith.constant 2 : index
      %c0_57 = arith.constant 0 : index
      %63 = vector.load %arg6[%c0_54, %c0_55, %c2_56, %c0_57] : memref<1x8x4x8xf32, #tpu.memory_space<vmem>>, vector<1x8x1x8xf32>
      %64 = vector.shape_cast %63 : vector<1x8x1x8xf32> to vector<8x8xf32>
      %65 = vector.shape_cast %62 : vector<8x8xf32> to vector<1x8x1x8xf32>
      tpu.vector_store %arg6[%c0_54, %c0_55, %c2_56, %c0_57], %65 {strides = array<i32>} : memref<1x8x4x8xf32, #tpu.memory_space<vmem>>, vector<1x8x1x8xf32>,
      %c3 = arith.constant 3 : index
      %c0_58 = arith.constant 0 : index
      %c0_59 = arith.constant 0 : index
      %66 = vector.load %arg9[%c3, %c0_58, %c0_59] : memref<4x8x8xf32, #tpu.memory_space<vmem>>, vector<1x8x8xf32>
      %67 = vector.shape_cast %66 : vector<1x8x8xf32> to vector<8x8xf32>
      %68 = vector.extract_strided_slice %38 {offsets = [3, 0, 0], sizes = [1, 8, 1], strides = [1, 1, 1]} : vector<4x8x1xf32> to vector<1x8x1xf32>
      %69 = vector.shape_cast %68 : vector<1x8x1xf32> to vector<8x1xf32>
      %70 = vector.broadcast %69 : vector<8x1xf32> to vector<8x8xf32>
      %71 = arith.mulf %67, %70 : vector<8x8xf32>
      %c0_60 = arith.constant 0 : index
      %c0_61 = arith.constant 0 : index
      %c3_62 = arith.constant 3 : index
      %c0_63 = arith.constant 0 : index
      %72 = vector.load %arg6[%c0_60, %c0_61, %c3_62, %c0_63] : memref<1x8x4x8xf32, #tpu.memory_space<vmem>>, vector<1x8x1x8xf32>
      %73 = vector.shape_cast %72 : vector<1x8x1x8xf32> to vector<8x8xf32>
      %74 = vector.shape_cast %71 : vector<8x8xf32> to vector<1x8x1x8xf32>
      tpu.vector_store %arg6[%c0_60, %c0_61, %c3_62, %c0_63], %74 {strides = array<i32>} : memref<1x8x4x8xf32, #tpu.memory_space<vmem>>, vector<1x8x1x8xf32>,
    } else {
    }
    return
  }
  func.func @transform_0(%arg0: i32, %arg1: i32, %arg2: i32) -> (i32, i32, i32, i32) {
    %c0_i32 = arith.constant 0 : i32
    %c0_i32_0 = arith.constant 0 : i32
    %c0_i32_1 = arith.constant 0 : i32
    return %arg0, %c0_i32, %arg1, %c0_i32_0 : i32, i32, i32, i32
  }
  func.func @transform_1(%arg0: i32, %arg1: i32, %arg2: i32) -> (i32, i32, i32, i32) {
    %c0_i32 = arith.constant 0 : i32
    %c0_i32_0 = arith.constant 0 : i32
    %c0_i32_1 = arith.constant 0 : i32
    return %arg0, %c0_i32, %arg2, %c0_i32_0 : i32, i32, i32, i32
  }
  func.func @transform_2(%arg0: i32, %arg1: i32, %arg2: i32) -> (i32, i32, i32, i32) {
    %c0_i32 = arith.constant 0 : i32
    %c0_i32_0 = arith.constant 0 : i32
    %c0_i32_1 = arith.constant 0 : i32
    return %arg0, %c0_i32, %arg2, %c0_i32_0 : i32, i32, i32, i32
  }
  func.func @transform_3(%arg0: i32, %arg1: i32, %arg2: i32) -> (i32, i32, i32, i32) {
    %c0_i32 = arith.constant 0 : i32
    %c0_i32_0 = arith.constant 0 : i32
    %c0_i32_1 = arith.constant 0 : i32
    return %arg0, %arg1, %c0_i32, %c0_i32_0 : i32, i32, i32, i32
  }
}

</mosaic_0001>

<llo_original>
// kernel: multi_head_attention.1
$region0: #{multi_head_attention.1}
  #allocation0 [shape = 'u32[]', space=smem, size = 0x4, offset = 0x4, fixed_abs, tag = 'smem constant byte address 0x4 - core index']
  #allocation1 [shape = 'u32[72,128]{1,0:T(1,128)}', space=vmem, size = 0x9000, scoped, tag = 'internal scratch']
  #allocation2 [shape = 'f32[4,8,1]{2,1,0:T(8,128)}', space=vmem, size = 0x4000, scoped, tag = 'scratch operand']
  #allocation3 [shape = 'f32[4,8,1]{2,1,0:T(8,128)}', space=vmem, size = 0x4000, scoped, tag = 'scratch operand']
  #allocation4 [shape = 'f32[4,8,8]{2,1,0:T(8,128)}', space=vmem, size = 0x4000, scoped, tag = 'scratch operand']
  %s0 = inlined_call_operand.vmem [shape: f32[2,4,8,8], index: 0, kind: input, shape index: {}]
  %s1 = inlined_call_operand.vmem [shape: f32[2,4,8,8], index: 1, kind: input, shape index: {}]
  %s2 = inlined_call_operand.vmem [shape: f32[2,4,8,8], index: 2, kind: input, shape index: {}]
  %s3 = inlined_call_operand.vmem [shape: f32[2,8,4,8], index: 3, kind: output, shape index: {}]
  %s4 = sld [smem:[#allocation0]]
  $region53: #{multi_head_attention.1} parent=0
    _
  %s6 = ssub.s32 1, %s4
  %s7 = scalar_select 0, %s6, %s4
  loop: start=0, step=1, limit=4
  $region2: #{multi_head_attention.1} parent=0 // loop_pre_header
    _
  $region3: #{multi_head_attention.1} parent=0 // loop_header
    %s9 = sphi 0, %s13
    %p10 = scmp.ge.s32.totalorder %s9, 4
    %s16 = sphi 0, %s35
    %s17 = sphi 0, %s31
    %s18 = sphi 0, %s27
    %s19 = sphi 0, %s16
    %s20 = sphi 0, %s17
    %s21 = sphi 0, %s18
    %s22 = sphi 0, %s19
    %s23 = sphi 0, %s20
    %s24 = sphi 0, %s21
    %s40 = sphi 0, %s42
    %s43 = sphi 0, %s40
    %s44 = sphi 0, %s43
    %s60 = sphi 0, %s44
    %s68 = sphi 0, %s70
    %s71 = sphi 0, %s68
    %s72 = sphi 0, %s71
    %s88 = sphi 0, %s72
    %s96 = sphi 0, %s98
    %s99 = sphi 0, %s96
    %s100 = sphi 0, %s99
    %s116 = sphi 0, %s100
    %s124 = sphi 0, %s126
    %s127 = sphi 0, %s124
    %s128 = sphi 0, %s127
    %s144 = sphi 0, %s128
  $region4: #{multi_head_attention.1} parent=0 // loop_header_branch
    %12 = sbr.rel (%p10) target = $region8
  $region5: #{multi_head_attention.1} parent=0 // loop_body
    %s14 = ssub.s32 %s9, 1
    %s15 = ssub.s32 %s9, 2
    %s25 = sadd.s32 1, %s18
    %p26 = scmp.ge.s32.totalorder %s25, 1
    %s27 = scalar_select %p26, 0, %s25
    %s28 = sadd.s32 1, %s17
    %s29 = scalar_select %p26, %s28, %s17
    %p30 = scmp.ge.s32.totalorder %s29, 1
    %s31 = scalar_select %p30, 0, %s29
    %s32 = sadd.s32 1, %s16
    %s33 = scalar_select %p30, %s32, %s16
    %p34 = scmp.ge.s32.totalorder %s33, 2
    %s35 = scalar_select %p34, 0, %s33
    %s36 = ssub.s32 %s16, %s35
    %s37 = ssub.s32 %s17, %s31
    %s38 = sor.u32 %s36, %s37
    %p39 = scmp.eq.s32.totalorder %s38, 0
    %s41 = sadd.s32 %s40, 1
    %s42 = scalar_select %p39, %s40, %s41
    %p45 = pneg %p39
    %p46 = scmp.eq.s32.totalorder %s9, 1
    %p47 = por %p45, %p46
    %p48 = scmp.ne.s32.totalorder %s40, %s43
    %p49 = scmp.eq.s32.totalorder %s9, 0
    %p50 = por %p48, %p49
    %p51 = scmp.ne.s32.totalorder %s40, %s43
    %p52 = scmp.eq.s32.totalorder %s14, 1
    %p53 = por %p51, %p52
    %p54 = scmp.ne.s32.totalorder %s43, %s44
    %p55 = scmp.eq.s32.totalorder %s14, 0
    %p56 = por %p54, %p55
    %p57 = scmp.ne.s32.totalorder %s43, %s44
    %p58 = scmp.eq.s32.totalorder %s15, 1
    %p59 = por %p57, %p58
    %p61 = scmp.ne.s32.totalorder %s44, %s60
    %p62 = scmp.eq.s32.totalorder %s15, 0
    %p63 = por %p61, %p62
    %s64 = ssub.s32 %s16, %s35
    %s65 = ssub.s32 %s18, %s27
    %s66 = sor.u32 %s64, %s65
    %p67 = scmp.eq.s32.totalorder %s66, 0
    %s69 = sadd.s32 %s68, 1
    %s70 = scalar_select %p67, %s68, %s69
    %p73 = pneg %p67
    %p74 = scmp.eq.s32.totalorder %s9, 1
    %p75 = por %p73, %p74
    %p76 = scmp.ne.s32.totalorder %s68, %s71
    %p77 = scmp.eq.s32.totalorder %s9, 0
    %p78 = por %p76, %p77
    %p79 = scmp.ne.s32.totalorder %s68, %s71
    %p80 = scmp.eq.s32.totalorder %s14, 1
    %p81 = por %p79, %p80
    %p82 = scmp.ne.s32.totalorder %s71, %s72
    %p83 = scmp.eq.s32.totalorder %s14, 0
    %p84 = por %p82, %p83
    %p85 = scmp.ne.s32.totalorder %s71, %s72
    %p86 = scmp.eq.s32.totalorder %s15, 1
    %p87 = por %p85, %p86
    %p89 = scmp.ne.s32.totalorder %s72, %s88
    %p90 = scmp.eq.s32.totalorder %s15, 0
    %p91 = por %p89, %p90
    %s92 = ssub.s32 %s16, %s35
    %s93 = ssub.s32 %s18, %s27
    %s94 = sor.u32 %s92, %s93
    %p95 = scmp.eq.s32.totalorder %s94, 0
    %s97 = sadd.s32 %s96, 1
    %s98 = scalar_select %p95, %s96, %s97
    %p101 = pneg %p95
    %p102 = scmp.eq.s32.totalorder %s9, 1
    %p103 = por %p101, %p102
    %p104 = scmp.ne.s32.totalorder %s96, %s99
    %p105 = scmp.eq.s32.totalorder %s9, 0
    %p106 = por %p104, %p105
    %p107 = scmp.ne.s32.totalorder %s96, %s99
    %p108 = scmp.eq.s32.totalorder %s14, 1
    %p109 = por %p107, %p108
    %p110 = scmp.ne.s32.totalorder %s99, %s100
    %p111 = scmp.eq.s32.totalorder %s14, 0
    %p112 = por %p110, %p111
    %p113 = scmp.ne.s32.totalorder %s99, %s100
    %p114 = scmp.eq.s32.totalorder %s15, 1
    %p115 = por %p113, %p114
    %p117 = scmp.ne.s32.totalorder %s100, %s116
    %p118 = scmp.eq.s32.totalorder %s15, 0
    %p119 = por %p117, %p118
    %s120 = ssub.s32 %s16, %s35
    %s121 = ssub.s32 %s17, %s31
    %s122 = sor.u32 %s120, %s121
    %p123 = scmp.eq.s32.totalorder %s122, 0
    %s125 = sadd.s32 %s124, 1
    %s126 = scalar_select %p123, %s124, %s125
    %p129 = pneg %p123
    %p130 = scmp.eq.s32.totalorder %s9, 1
    %p131 = por %p129, %p130
    %p132 = scmp.ne.s32.totalorder %s124, %s127
    %p133 = scmp.eq.s32.totalorder %s9, 0
    %p134 = por %p132, %p133
    %p135 = scmp.ne.s32.totalorder %s124, %s127
    %p136 = scmp.eq.s32.totalorder %s14, 1
    %p137 = por %p135, %p136
    %p138 = scmp.ne.s32.totalorder %s127, %s128
    %p139 = scmp.eq.s32.totalorder %s14, 0
    %p140 = por %p138, %p139
    %p141 = scmp.ne.s32.totalorder %s127, %s128
    %p142 = scmp.eq.s32.totalorder %s15, 1
    %p143 = por %p141, %p142
    %p145 = scmp.ne.s32.totalorder %s128, %s144
    %p146 = scmp.eq.s32.totalorder %s15, 0
    %p147 = por %p145, %p146
    %p148 = scmp.le.s32.totalorder 1, %s9
    %p149 = scmp.lt.s32.totalorder %s9, 3
    %p150 = pnand %p148, %p149
    %p151 = pneg %p150
    // Predicated region
    $region9: #{multi_head_attention.1} parent=5 // pred_check
      _
    $region10: #{multi_head_attention.1} parent=5 // pred_check_branch
      %153 = sbr.rel (%p150) target = $region12
    $region11: #{multi_head_attention.1} parent=5 // pred_region
      %s154 = ssub.s32 %s9, 1
    $region12: #{multi_head_attention.1} parent=5 // pred_fallthru
      _
    %p155 = scmp.lt.s32.totalorder %s9, 2
    // Predicated region
    $region13: #{multi_head_attention.1} parent=5 // pred_check
      %p156 = pneg %p155
    $region14: #{multi_head_attention.1} parent=5 // pred_check_branch
      %158 = sbr.rel (%p156) target = $region16
    $region15: #{multi_head_attention.1} parent=5 // pred_region
      // Predicated region
      $region17: #{multi_head_attention.1} parent=15 // pred_check
        %p159 = pneg %p50
      $region18: #{multi_head_attention.1} parent=15 // pred_check_branch
        %161 = sbr.rel (%p159) target = $region20
      $region19: #{multi_head_attention.1} parent=15 // pred_region
        %p162 = scmp.lt.s32.totalorder %s16, 1
        %s163 = scalar_select %p162, %s16, 1
        %p164 = scmp.lt.s32.totalorder %s17, 0
        %s165 = scalar_select %p164, %s17, 0
        %s166 = smul.addr %s163, 4
        %s167 = sadd.s32 %s165, %s166
        %s168 = smul.addr %s167, 8
        %s169 = scalar_lea.vmem %s0, %s168
      $region20: #{multi_head_attention.1} parent=15 // pred_fallthru
        _
      // Predicated region
      $region21: #{multi_head_attention.1} parent=15 // pred_check
        %p170 = pneg %p78
      $region22: #{multi_head_attention.1} parent=15 // pred_check_branch
        %172 = sbr.rel (%p170) target = $region24
      $region23: #{multi_head_attention.1} parent=15 // pred_region
        %p173 = scmp.lt.s32.totalorder %s16, 1
        %s174 = scalar_select %p173, %s16, 1
        %p175 = scmp.lt.s32.totalorder %s18, 0
        %s176 = scalar_select %p175, %s18, 0
        %s177 = smul.addr %s174, 4
        %s178 = sadd.s32 %s176, %s177
        %s179 = smul.addr %s178, 8
        %s180 = scalar_lea.vmem %s1, %s179
      $region24: #{multi_head_attention.1} parent=15 // pred_fallthru
        _
      // Predicated region
      $region25: #{multi_head_attention.1} parent=15 // pred_check
        %p181 = pneg %p106
      $region26: #{multi_head_attention.1} parent=15 // pred_check_branch
        %183 = sbr.rel (%p181) target = $region28
      $region27: #{multi_head_attention.1} parent=15 // pred_region
        %p184 = scmp.lt.s32.totalorder %s16, 1
        %s185 = scalar_select %p184, %s16, 1
        %p186 = scmp.lt.s32.totalorder %s18, 0
        %s187 = scalar_select %p186, %s18, 0
        %s188 = smul.addr %s185, 4
        %s189 = sadd.s32 %s187, %s188
        %s190 = smul.addr %s189, 8
        %s191 = scalar_lea.vmem %s2, %s190
      $region28: #{multi_head_attention.1} parent=15 // pred_fallthru
        _
    $region16: #{multi_head_attention.1} parent=5 // pred_fallthru
      _
    %p192 = scmp.le.s32.totalorder 1, %s9
    %p193 = scmp.lt.s32.totalorder %s9, 3
    %p194 = pnand %p192, %p193
    %p195 = pneg %p194
    // Predicated region
    $region29: #{multi_head_attention.1} parent=5 // pred_check
      _
    $region30: #{multi_head_attention.1} parent=5 // pred_check_branch
      %197 = sbr.rel (%p194) target = $region32
    $region31: #{multi_head_attention.1} parent=5 // pred_region
      %s198 = ssub.s32 %s9, 1
      %p199 = scmp.lt.s32.totalorder %s19, 1
      %s200 = scalar_select %p199, %s19, 1
      %p201 = scmp.lt.s32.totalorder %s20, 0
      %s202 = scalar_select %p201, %s20, 0
      %s203 = smul.addr %s200, 4
      %s204 = sadd.s32 %s202, %s203
      %s205 = smul.addr %s204, 8
      %s206 = scalar_lea.vmem %s0, %s205
      %p207 = pneg %p56
      %p208 = pneg %p53
      %p209 = scmp.lt.s32.totalorder %s19, 1
      %s210 = scalar_select %p209, %s19, 1
      %p211 = scmp.lt.s32.totalorder %s21, 0
      %s212 = scalar_select %p211, %s21, 0
      %s213 = smul.addr %s210, 4
      %s214 = sadd.s32 %s212, %s213
      %s215 = smul.addr %s214, 8
      %s216 = scalar_lea.vmem %s1, %s215
      %p217 = pneg %p84
      %p218 = pneg %p81
      %p219 = scmp.lt.s32.totalorder %s19, 1
      %s220 = scalar_select %p219, %s19, 1
      %p221 = scmp.lt.s32.totalorder %s21, 0
      %s222 = scalar_select %p221, %s21, 0
      %s223 = smul.addr %s220, 4
      %s224 = sadd.s32 %s222, %s223
      %s225 = smul.addr %s224, 8
      %s226 = scalar_lea.vmem %s2, %s225
      %p227 = pneg %p112
      %p228 = pneg %p109
      %p229 = pneg %p140
      %p230 = pneg %p137
      %s231 = smul.u32 8, %s20
      %p232 = scmp.lt.s32.totalorder %s19, 1
      %s233 = scalar_select %p232, %s19, 1
      %p234 = scmp.lt.s32.totalorder %s231, 7
      %s235 = scalar_select %p234, %s231, 7
      %s236 = smul.addr %s233, 8
      %s237 = sadd.s32 %s235, %s236
      %s238 = smul.addr %s237, 4
      %s239 = scalar_lea.vmem %s3, %s238
      %p240 = scmp.lt.s32.totalorder %s19, 1
      %s241 = scalar_select %p240, %s19, 1
      %p242 = scmp.lt.s32.totalorder %s20, 0
      %s243 = scalar_select %p242, %s20, 0
      %s244 = smul.addr %s241, 4
      %s245 = sadd.s32 %s243, %s244
      %s246 = smul.addr %s245, 8
      %s247 = scalar_lea.vmem %s0, %s246
      %p248 = scmp.lt.s32.totalorder %s19, 1
      %s249 = scalar_select %p248, %s19, 1
      %p250 = scmp.lt.s32.totalorder %s21, 0
      %s251 = scalar_select %p250, %s21, 0
      %s252 = smul.addr %s249, 4
      %s253 = sadd.s32 %s251, %s252
      %s254 = smul.addr %s253, 8
      %s255 = scalar_lea.vmem %s1, %s254
      %p256 = scmp.lt.s32.totalorder %s19, 1
      %s257 = scalar_select %p256, %s19, 1
      %p258 = scmp.lt.s32.totalorder %s21, 0
      %s259 = scalar_select %p258, %s21, 0
      %s260 = smul.addr %s257, 4
      %s261 = sadd.s32 %s259, %s260
      %s262 = smul.addr %s261, 8
      %s263 = scalar_lea.vmem %s2, %s262
      %s264 = smul.u32 8, %s20
      %p265 = scmp.lt.s32.totalorder %s19, 1
      %s266 = scalar_select %p265, %s19, 1
      %p267 = scmp.lt.s32.totalorder %s264, 7
      %s268 = scalar_select %p267, %s264, 7
      %s269 = smul.addr %s266, 8
      %s270 = sadd.s32 %s268, %s269
      %s271 = smul.addr %s270, 4
      %s272 = scalar_lea.vmem %s3, %s271
      %s273 = smul.u32 8, %s20
      %p274 = scmp.eq.s32.totalorder %s21, 0
      // Predicated region
      $region33: #{multi_head_attention.1} parent=31 // pred_check
        %p275 = pneg %p274
      $region34: #{multi_head_attention.1} parent=31 // pred_check_branch
        %277 = sbr.rel (%p275) target = $region36
      $region35: #{multi_head_attention.1} parent=31 // pred_region
        %vm278 = vcmask 7168
        %279 = vst.msk [vmem:[#allocation2] sm:$0xff] %vm278, -inf
        %280 = vst.msk [vmem:[#allocation2 + $0x8] sm:$0xff] %vm278, -inf
        %281 = vst.msk [vmem:[#allocation2 + $0x10] sm:$0xff] %vm278, -inf
        %282 = vst.msk [vmem:[#allocation2 + $0x18] sm:$0xff] %vm278, -inf
        %283 = vst.msk [vmem:[#allocation3] sm:$0xff] %vm278, 0.0
        %284 = vst.msk [vmem:[#allocation3 + $0x8] sm:$0xff] %vm278, 0.0
        %285 = vst.msk [vmem:[#allocation3 + $0x10] sm:$0xff] %vm278, 0.0
        %286 = vst.msk [vmem:[#allocation3 + $0x18] sm:$0xff] %vm278, 0.0
        %vm287 = vcmask 64512
        %288 = vst.msk [vmem:[#allocation4] sm:$0xff] %vm287, 0.0
        %289 = vst.msk [vmem:[#allocation4 + $0x8] sm:$0xff] %vm287, 0.0
        %290 = vst.msk [vmem:[#allocation4 + $0x10] sm:$0xff] %vm287, 0.0
        %291 = vst.msk [vmem:[#allocation4 + $0x18] sm:$0xff] %vm287, 0.0
      $region36: #{multi_head_attention.1} parent=31 // pred_fallthru
        _
      %v292 = vld [vmem:[%s247] sm:$0xff]
      %v293 = vld [vmem:[%s247 + $0x8] sm:$0xff]
      %v294 = vld [vmem:[%s247 + $0x10] sm:$0xff]
      %v295 = vld [vmem:[%s247 + $0x18] sm:$0xff]
      %v296 = vld [vmem:[%s255] sm:$0xff]
      %v297 = vld [vmem:[%s255 + $0x8] sm:$0xff]
      %v298 = vld [vmem:[%s255 + $0x10] sm:$0xff]
      %v299 = vld [vmem:[%s255 + $0x18] sm:$0xff]
      %v300 = vld [vmem:[%s263] sm:$0xff]
      %v301 = vld [vmem:[%s263 + $0x8] sm:$0xff]
      %v302 = vld [vmem:[%s263 + $0x10] sm:$0xff]
      %v303 = vld [vmem:[%s263 + $0x18] sm:$0xff]
      %vm304 = vcmask 64512
      %v306 = vsel %vm304, %v292, 0
      %v309 = vsel %vm304, %v296, 0
      %311 = vmatpush.xpose.msra.mxu0 0.0
      %312 = vmatpush.xpose.msra.mxu0 0.0
      %313 = vmatpush.xpose.msra.mxu0 0.0
      %314 = vmatpush.xpose.msra.mxu0 0.0
      %315 = vmatpush.xpose.msra.mxu0 0.0
      %316 = vmatpush.xpose.msra.mxu0 0.0
      %317 = vmatpush.xpose.msra.mxu0 0.0
      %318 = vmatpush.xpose.msra.mxu0 0.0
      %319 = vmatpush.xpose.msra.mxu0 0.0
      %320 = vmatpush.xpose.msra.mxu0 0.0
      %321 = vmatpush.xpose.msra.mxu0 0.0
      %322 = vmatpush.xpose.msra.mxu0 0.0
      %323 = vmatpush.xpose.msra.mxu0 0.0
      %324 = vmatpush.xpose.msra.mxu0 0.0
      %325 = vmatpush.xpose.msra.mxu0 0.0
      %326 = vmatpush.xpose.msra.mxu0 %v309
      %327 = vmatmul.f32.gmra.mxu0 %v306
      %v328 = vpop.f32.mrf.mxu0
      %v329 = vadd.f32 0.0, %v328
      %330 = vdwg.mxu0
      %v332 = vsel %vm304, %v293, 0
      %v335 = vsel %vm304, %v297, 0
      %337 = vmatpush.xpose.msra.mxu0 0.0
      %338 = vmatpush.xpose.msra.mxu0 0.0
      %339 = vmatpush.xpose.msra.mxu0 0.0
      %340 = vmatpush.xpose.msra.mxu0 0.0
      %341 = vmatpush.xpose.msra.mxu0 0.0
      %342 = vmatpush.xpose.msra.mxu0 0.0
      %343 = vmatpush.xpose.msra.mxu0 0.0
      %344 = vmatpush.xpose.msra.mxu0 0.0
      %345 = vmatpush.xpose.msra.mxu0 0.0
      %346 = vmatpush.xpose.msra.mxu0 0.0
      %347 = vmatpush.xpose.msra.mxu0 0.0
      %348 = vmatpush.xpose.msra.mxu0 0.0
      %349 = vmatpush.xpose.msra.mxu0 0.0
      %350 = vmatpush.xpose.msra.mxu0 0.0
      %351 = vmatpush.xpose.msra.mxu0 0.0
      %352 = vmatpush.xpose.msra.mxu0 %v335
      %353 = vmatmul.f32.gmra.mxu0 %v332
      %v354 = vpop.f32.mrf.mxu0
      %v355 = vadd.f32 0.0, %v354
      %356 = vdwg.mxu0
      %v358 = vsel %vm304, %v294, 0
      %v361 = vsel %vm304, %v298, 0
      %363 = vmatpush.xpose.msra.mxu0 0.0
      %364 = vmatpush.xpose.msra.mxu0 0.0
      %365 = vmatpush.xpose.msra.mxu0 0.0
      %366 = vmatpush.xpose.msra.mxu0 0.0
      %367 = vmatpush.xpose.msra.mxu0 0.0
      %368 = vmatpush.xpose.msra.mxu0 0.0
      %369 = vmatpush.xpose.msra.mxu0 0.0
      %370 = vmatpush.xpose.msra.mxu0 0.0
      %371 = vmatpush.xpose.msra.mxu0 0.0
      %372 = vmatpush.xpose.msra.mxu0 0.0
      %373 = vmatpush.xpose.msra.mxu0 0.0
      %374 = vmatpush.xpose.msra.mxu0 0.0
      %375 = vmatpush.xpose.msra.mxu0 0.0
      %376 = vmatpush.xpose.msra.mxu0 0.0
      %377 = vmatpush.xpose.msra.mxu0 0.0
      %378 = vmatpush.xpose.msra.mxu0 %v361
      %379 = vmatmul.f32.gmra.mxu0 %v358
      %v380 = vpop.f32.mrf.mxu0
      %v381 = vadd.f32 0.0, %v380
      %382 = vdwg.mxu0
      %v384 = vsel %vm304, %v295, 0
      %v387 = vsel %vm304, %v299, 0
      %389 = vmatpush.xpose.msra.mxu0 0.0
      %390 = vmatpush.xpose.msra.mxu0 0.0
      %391 = vmatpush.xpose.msra.mxu0 0.0
      %392 = vmatpush.xpose.msra.mxu0 0.0
      %393 = vmatpush.xpose.msra.mxu0 0.0
      %394 = vmatpush.xpose.msra.mxu0 0.0
      %395 = vmatpush.xpose.msra.mxu0 0.0
      %396 = vmatpush.xpose.msra.mxu0 0.0
      %397 = vmatpush.xpose.msra.mxu0 0.0
      %398 = vmatpush.xpose.msra.mxu0 0.0
      %399 = vmatpush.xpose.msra.mxu0 0.0
      %400 = vmatpush.xpose.msra.mxu0 0.0
      %401 = vmatpush.xpose.msra.mxu0 0.0
      %402 = vmatpush.xpose.msra.mxu0 0.0
      %403 = vmatpush.xpose.msra.mxu0 0.0
      %404 = vmatpush.xpose.msra.mxu0 %v387
      %405 = vmatmul.f32.gmra.mxu0 %v384
      %v406 = vpop.f32.mrf.mxu0
      %v407 = vadd.f32 0.0, %v406
      %408 = vdwg.mxu0
      %v409 = vmul.f32 %v329, 0.35355338
      %v410 = vmul.f32 %v355, 0.35355338
      %v411 = vmul.f32 %v381, 0.35355338
      %v412 = vmul.f32 %v407, 0.35355338
      %v413 = vld [vmem:[#allocation2] sm:$0xff]
      %v414 = vld [vmem:[#allocation2 + $0x8] sm:$0xff]
      %v415 = vld [vmem:[#allocation2 + $0x10] sm:$0xff]
      %v416 = vld [vmem:[#allocation2 + $0x18] sm:$0xff]
      %v417 = vsel %vm304, %v409, -inf
      %418 = vmax.xlane.f32.xlu0 %v417
      %v419 = vpop.xlane.xlu0 %418
      %v420 = vsel %vm304, %v410, -inf
      %421 = vmax.xlane.f32.xlu0 %v420
      %v422 = vpop.xlane.xlu0 %421
      %v423 = vsel %vm304, %v411, -inf
      %424 = vmax.xlane.f32.xlu0 %v423
      %v425 = vpop.xlane.xlu0 %424
      %v426 = vsel %vm304, %v412, -inf
      %427 = vmax.xlane.f32.xlu0 %v426
      %v428 = vpop.xlane.xlu0 %427
      %v429 = vmax.f32 %v413, %v419
      %v430 = vmax.f32 %v414, %v422
      %v431 = vmax.f32 %v415, %v425
      %v432 = vmax.f32 %v416, %v428
      %v433 = vsub.f32 %v413, %v429
      %v434 = vsub.f32 %v414, %v430
      %v435 = vsub.f32 %v415, %v431
      %v436 = vsub.f32 %v416, %v432
      %v437 = vmul.f32 %v433, 1.442695
      %v438 = vpow.pop %v437
      %v439 = vmul.f32 %v434, 1.442695
      %v440 = vpow.pop %v439
      %v441 = vmul.f32 %v435, 1.442695
      %v442 = vpow.pop %v441
      %v443 = vmul.f32 %v436, 1.442695
      %v444 = vpow.pop %v443
      %446 = vset.pattern.permute.xlu0 0
      %447 = vperm.xlu0 %446, %v429
      %v448 = vpop.permute.xlu0 %447
      %451 = vset.pattern.permute.xlu0 0
      %452 = vperm.xlu0 %451, %v430
      %v453 = vpop.permute.xlu0 %452
      %456 = vset.pattern.permute.xlu0 0
      %457 = vperm.xlu0 %456, %v431
      %v458 = vpop.permute.xlu0 %457
      %461 = vset.pattern.permute.xlu0 0
      %462 = vperm.xlu0 %461, %v432
      %v463 = vpop.permute.xlu0 %462
      %v465 = vsub.f32 %v409, %v448
      %v466 = vsub.f32 %v410, %v453
      %v467 = vsub.f32 %v411, %v458
      %v468 = vsub.f32 %v412, %v463
      %v469 = vmul.f32 %v465, 1.442695
      %v470 = vpow.pop %v469
      %v471 = vmul.f32 %v466, 1.442695
      %v472 = vpow.pop %v471
      %v473 = vmul.f32 %v467, 1.442695
      %v474 = vpow.pop %v473
      %v475 = vmul.f32 %v468, 1.442695
      %v476 = vpow.pop %v475
      %v477 = vld [vmem:[#allocation3] sm:$0xff]
      %v478 = vld [vmem:[#allocation3 + $0x8] sm:$0xff]
      %v479 = vld [vmem:[#allocation3 + $0x10] sm:$0xff]
      %v480 = vld [vmem:[#allocation3 + $0x18] sm:$0xff]
      %v481 = vmul.f32 %v438, %v477
      %v482 = vmul.f32 %v440, %v478
      %v483 = vmul.f32 %v442, %v479
      %v484 = vmul.f32 %v444, %v480
      %v485 = vsel %vm304, %v470, 0.0
      %486 = vadd.xlane.f32.xlu0 %v485
      %v487 = vpop.xlane.xlu0 %486
      %v488 = vsel %vm304, %v472, 0.0
      %489 = vadd.xlane.f32.xlu0 %v488
      %v490 = vpop.xlane.xlu0 %489
      %v491 = vsel %vm304, %v474, 0.0
      %492 = vadd.xlane.f32.xlu0 %v491
      %v493 = vpop.xlane.xlu0 %492
      %v494 = vsel %vm304, %v476, 0.0
      %495 = vadd.xlane.f32.xlu0 %v494
      %v496 = vpop.xlane.xlu0 %495
      %v497 = vadd.f32 %v481, %v487
      %v498 = vadd.f32 %v482, %v490
      %v499 = vadd.f32 %v483, %v493
      %v500 = vadd.f32 %v484, %v496
      %vm501 = vcmask 7168
      %502 = vst.msk [vmem:[#allocation3] sm:$0xff] %vm501, %v497
      %503 = vst.msk [vmem:[#allocation3 + $0x8] sm:$0xff] %vm501, %v498
      %504 = vst.msk [vmem:[#allocation3 + $0x10] sm:$0xff] %vm501, %v499
      %505 = vst.msk [vmem:[#allocation3 + $0x18] sm:$0xff] %vm501, %v500
      %v506 = vld [vmem:[#allocation4] sm:$0xff]
      %v507 = vld [vmem:[#allocation4 + $0x8] sm:$0xff]
      %v508 = vld [vmem:[#allocation4 + $0x10] sm:$0xff]
      %v509 = vld [vmem:[#allocation4 + $0x18] sm:$0xff]
      %511 = vset.pattern.permute.xlu0 0
      %512 = vperm.xlu0 %511, %v438
      %v513 = vpop.permute.xlu0 %512
      %516 = vset.pattern.permute.xlu0 0
      %517 = vperm.xlu0 %516, %v440
      %v518 = vpop.permute.xlu0 %517
      %521 = vset.pattern.permute.xlu0 0
      %522 = vperm.xlu0 %521, %v442
      %v523 = vpop.permute.xlu0 %522
      %526 = vset.pattern.permute.xlu0 0
      %527 = vperm.xlu0 %526, %v444
      %v528 = vpop.permute.xlu0 %527
      %v530 = vmul.f32 %v513, %v506
      %v531 = vmul.f32 %v518, %v507
      %v532 = vmul.f32 %v523, %v508
      %v533 = vmul.f32 %v528, %v509
      %v535 = vsel %vm304, %v470, 0
      %537 = vmatpush.msra.mxu0 0.0
      %538 = vmatpush.msra.mxu0 0.0
      %539 = vmatpush.msra.mxu0 0.0
      %540 = vmatpush.msra.mxu0 0.0
      %541 = vmatpush.msra.mxu0 0.0
      %542 = vmatpush.msra.mxu0 0.0
      %543 = vmatpush.msra.mxu0 0.0
      %544 = vmatpush.msra.mxu0 0.0
      %545 = vmatpush.msra.mxu0 0.0
      %546 = vmatpush.msra.mxu0 0.0
      %547 = vmatpush.msra.mxu0 0.0
      %548 = vmatpush.msra.mxu0 0.0
      %549 = vmatpush.msra.mxu0 0.0
      %550 = vmatpush.msra.mxu0 0.0
      %551 = vmatpush.msra.mxu0 0.0
      %552 = vmatpush.msra.mxu0 %v300
      %553 = vmatmul.f32.gmra.mxu0 %v535
      %v554 = vpop.f32.mrf.mxu0
      %v555 = vadd.f32 0.0, %v554
      %556 = vdwg.mxu0
      %v558 = vsel %vm304, %v472, 0
      %560 = vmatpush.msra.mxu0 0.0
      %561 = vmatpush.msra.mxu0 0.0
      %562 = vmatpush.msra.mxu0 0.0
      %563 = vmatpush.msra.mxu0 0.0
      %564 = vmatpush.msra.mxu0 0.0
      %565 = vmatpush.msra.mxu0 0.0
      %566 = vmatpush.msra.mxu0 0.0
      %567 = vmatpush.msra.mxu0 0.0
      %568 = vmatpush.msra.mxu0 0.0
      %569 = vmatpush.msra.mxu0 0.0
      %570 = vmatpush.msra.mxu0 0.0
      %571 = vmatpush.msra.mxu0 0.0
      %572 = vmatpush.msra.mxu0 0.0
      %573 = vmatpush.msra.mxu0 0.0
      %574 = vmatpush.msra.mxu0 0.0
      %575 = vmatpush.msra.mxu0 %v301
      %576 = vmatmul.f32.gmra.mxu0 %v558
      %v577 = vpop.f32.mrf.mxu0
      %v578 = vadd.f32 0.0, %v577
      %579 = vdwg.mxu0
      %v581 = vsel %vm304, %v474, 0
      %583 = vmatpush.msra.mxu0 0.0
      %584 = vmatpush.msra.mxu0 0.0
      %585 = vmatpush.msra.mxu0 0.0
      %586 = vmatpush.msra.mxu0 0.0
      %587 = vmatpush.msra.mxu0 0.0
      %588 = vmatpush.msra.mxu0 0.0
      %589 = vmatpush.msra.mxu0 0.0
      %590 = vmatpush.msra.mxu0 0.0
      %591 = vmatpush.msra.mxu0 0.0
      %592 = vmatpush.msra.mxu0 0.0
      %593 = vmatpush.msra.mxu0 0.0
      %594 = vmatpush.msra.mxu0 0.0
      %595 = vmatpush.msra.mxu0 0.0
      %596 = vmatpush.msra.mxu0 0.0
      %597 = vmatpush.msra.mxu0 0.0
      %598 = vmatpush.msra.mxu0 %v302
      %599 = vmatmul.f32.gmra.mxu0 %v581
      %v600 = vpop.f32.mrf.mxu0
      %v601 = vadd.f32 0.0, %v600
      %602 = vdwg.mxu0
      %v604 = vsel %vm304, %v476, 0
      %606 = vmatpush.msra.mxu0 0.0
      %607 = vmatpush.msra.mxu0 0.0
      %608 = vmatpush.msra.mxu0 0.0
      %609 = vmatpush.msra.mxu0 0.0
      %610 = vmatpush.msra.mxu0 0.0
      %611 = vmatpush.msra.mxu0 0.0
      %612 = vmatpush.msra.mxu0 0.0
      %613 = vmatpush.msra.mxu0 0.0
      %614 = vmatpush.msra.mxu0 0.0
      %615 = vmatpush.msra.mxu0 0.0
      %616 = vmatpush.msra.mxu0 0.0
      %617 = vmatpush.msra.mxu0 0.0
      %618 = vmatpush.msra.mxu0 0.0
      %619 = vmatpush.msra.mxu0 0.0
      %620 = vmatpush.msra.mxu0 0.0
      %621 = vmatpush.msra.mxu0 %v303
      %622 = vmatmul.f32.gmra.mxu0 %v604
      %v623 = vpop.f32.mrf.mxu0
      %v624 = vadd.f32 0.0, %v623
      %625 = vdwg.mxu0
      %v626 = vadd.f32 %v530, %v555
      %v627 = vadd.f32 %v531, %v578
      %v628 = vadd.f32 %v532, %v601
      %v629 = vadd.f32 %v533, %v624
      %630 = vst.msk [vmem:[#allocation4] sm:$0xff] %vm304, %v626
      %631 = vst.msk [vmem:[#allocation4 + $0x8] sm:$0xff] %vm304, %v627
      %632 = vst.msk [vmem:[#allocation4 + $0x10] sm:$0xff] %vm304, %v628
      %633 = vst.msk [vmem:[#allocation4 + $0x18] sm:$0xff] %vm304, %v629
      %634 = vst.msk [vmem:[#allocation2] sm:$0xff] %vm501, %v429
      %635 = vst.msk [vmem:[#allocation2 + $0x8] sm:$0xff] %vm501, %v430
      %636 = vst.msk [vmem:[#allocation2 + $0x10] sm:$0xff] %vm501, %v431
      %637 = vst.msk [vmem:[#allocation2 + $0x18] sm:$0xff] %vm501, %v432
      // Predicated region
      $region37: #{multi_head_attention.1} parent=31 // pred_check
        %p638 = pneg %p274
      $region38: #{multi_head_attention.1} parent=31 // pred_check_branch
        %640 = sbr.rel (%p638) target = $region40
      $region39: #{multi_head_attention.1} parent=31 // pred_region
        %v641 = vld [vmem:[#allocation3] sm:$0xff]
        %v642 = vld [vmem:[#allocation3 + $0x8] sm:$0xff]
        %v643 = vld [vmem:[#allocation3 + $0x10] sm:$0xff]
        %v644 = vld [vmem:[#allocation3 + $0x18] sm:$0xff]
        %v645 = vrcp.pop %v641
        %v646 = vmul.f32 %v641, %v645
        %v647 = vsub.f32 1.0, %v646
        %v648 = vmul.f32 %v645, %v647
        %v649 = vadd.f32 %v645, %v648
        %vm650 = vweird.f32 %v641
        %vm651 = vweird.f32 %v645
        %vm652 = vmor %vm650, %vm651
        %v653 = vsel %vm652, %v645, %v649
        %v654 = vand.u32 2147483647, %v641
        %vm655 = vcmp.eq.f32.partialorder %v654, 8.507059e+37
        %v656 = vand.u32 %v641, 2147483648
        %v657 = vor.u32 1.1754944e-38, %v656
        %v658 = vsel %vm655, %v657, %v653
        %v659 = vrcp.pop %v642
        %v660 = vmul.f32 %v642, %v659
        %v661 = vsub.f32 1.0, %v660
        %v662 = vmul.f32 %v659, %v661
        %v663 = vadd.f32 %v659, %v662
        %vm664 = vweird.f32 %v642
        %vm665 = vweird.f32 %v659
        %vm666 = vmor %vm664, %vm665
        %v667 = vsel %vm666, %v659, %v663
        %v668 = vand.u32 2147483647, %v642
        %vm669 = vcmp.eq.f32.partialorder %v668, 8.507059e+37
        %v670 = vand.u32 %v642, 2147483648
        %v671 = vor.u32 1.1754944e-38, %v670
        %v672 = vsel %vm669, %v671, %v667
        %v673 = vrcp.pop %v643
        %v674 = vmul.f32 %v643, %v673
        %v675 = vsub.f32 1.0, %v674
        %v676 = vmul.f32 %v673, %v675
        %v677 = vadd.f32 %v673, %v676
        %vm678 = vweird.f32 %v643
        %vm679 = vweird.f32 %v673
        %vm680 = vmor %vm678, %vm679
        %v681 = vsel %vm680, %v673, %v677
        %v682 = vand.u32 2147483647, %v643
        %vm683 = vcmp.eq.f32.partialorder %v682, 8.507059e+37
        %v684 = vand.u32 %v643, 2147483648
        %v685 = vor.u32 1.1754944e-38, %v684
        %v686 = vsel %vm683, %v685, %v681
        %v687 = vrcp.pop %v644
        %v688 = vmul.f32 %v644, %v687
        %v689 = vsub.f32 1.0, %v688
        %v690 = vmul.f32 %v687, %v689
        %v691 = vadd.f32 %v687, %v690
        %vm692 = vweird.f32 %v644
        %vm693 = vweird.f32 %v687
        %vm694 = vmor %vm692, %vm693
        %v695 = vsel %vm694, %v687, %v691
        %v696 = vand.u32 2147483647, %v644
        %vm697 = vcmp.eq.f32.partialorder %v696, 8.507059e+37
        %v698 = vand.u32 %v644, 2147483648
        %v699 = vor.u32 1.1754944e-38, %v698
        %v700 = vsel %vm697, %v699, %v695
        %v701 = vld [vmem:[#allocation4] sm:$0xff]
        %703 = vset.pattern.permute.xlu0 0
        %704 = vperm.xlu0 %703, %v658
        %v705 = vpop.permute.xlu0 %704
        %v707 = vmul.f32 %v701, %v705
        %v709 = vrot.slane %v707, 1
        %v710 = vrot.slane %v707, 2
        %v711 = vrot.slane %v707, 3
        %v712 = vrot.slane %v707, 4
        %v713 = vrot.slane %v707, 5
        %v714 = vrot.slane %v707, 6
        %v715 = vrot.slane %v707, 7
        %vm723 = vcmask 57344
        %724 = vst.msk [vmem:[%s272] sm:$0x1] %vm723, %v707
        %725 = vst.msk [vmem:[%s272 + $0x4] sm:$0x1] %vm723, %v709
        %726 = vst.msk [vmem:[%s272 + $0x8] sm:$0x1] %vm723, %v710
        %727 = vst.msk [vmem:[%s272 + $0xc] sm:$0x1] %vm723, %v711
        %728 = vst.msk [vmem:[%s272 + $0x10] sm:$0x1] %vm723, %v712
        %729 = vst.msk [vmem:[%s272 + $0x14] sm:$0x1] %vm723, %v713
        %730 = vst.msk [vmem:[%s272 + $0x18] sm:$0x1] %vm723, %v714
        %731 = vst.msk [vmem:[%s272 + $0x1c] sm:$0x1] %vm723, %v715
        %s732 = scalar_lea.vmem [#allocation4], 8
        %v733 = vld [vmem:[%s732] sm:$0xff]
        %735 = vset.pattern.permute.xlu0 0
        %736 = vperm.xlu0 %735, %v672
        %v737 = vpop.permute.xlu0 %736
        %v739 = vmul.f32 %v733, %v737
        %v741 = vrot.slane %v739, 1
        %v742 = vrot.slane %v739, 2
        %v743 = vrot.slane %v739, 3
        %v744 = vrot.slane %v739, 4
        %v745 = vrot.slane %v739, 5
        %v746 = vrot.slane %v739, 6
        %v747 = vrot.slane %v739, 7
        %755 = vst.msk [vmem:[%s272 + $0x1] sm:$0x1] %vm723, %v739
        %756 = vst.msk [vmem:[%s272 + $0x5] sm:$0x1] %vm723, %v741
        %757 = vst.msk [vmem:[%s272 + $0x9] sm:$0x1] %vm723, %v742
        %758 = vst.msk [vmem:[%s272 + $0xd] sm:$0x1] %vm723, %v743
        %759 = vst.msk [vmem:[%s272 + $0x11] sm:$0x1] %vm723, %v744
        %760 = vst.msk [vmem:[%s272 + $0x15] sm:$0x1] %vm723, %v745
        %761 = vst.msk [vmem:[%s272 + $0x19] sm:$0x1] %vm723, %v746
        %762 = vst.msk [vmem:[%s272 + $0x1d] sm:$0x1] %vm723, %v747
        %s763 = scalar_lea.vmem [#allocation4], 16
        %v764 = vld [vmem:[%s763] sm:$0xff]
        %766 = vset.pattern.permute.xlu0 0
        %767 = vperm.xlu0 %766, %v686
        %v768 = vpop.permute.xlu0 %767
        %v770 = vmul.f32 %v764, %v768
        %v772 = vrot.slane %v770, 1
        %v773 = vrot.slane %v770, 2
        %v774 = vrot.slane %v770, 3
        %v775 = vrot.slane %v770, 4
        %v776 = vrot.slane %v770, 5
        %v777 = vrot.slane %v770, 6
        %v778 = vrot.slane %v770, 7
        %786 = vst.msk [vmem:[%s272 + $0x2] sm:$0x1] %vm723, %v770
        %787 = vst.msk [vmem:[%s272 + $0x6] sm:$0x1] %vm723, %v772
        %788 = vst.msk [vmem:[%s272 + $0xa] sm:$0x1] %vm723, %v773
        %789 = vst.msk [vmem:[%s272 + $0xe] sm:$0x1] %vm723, %v774
        %790 = vst.msk [vmem:[%s272 + $0x12] sm:$0x1] %vm723, %v775
        %791 = vst.msk [vmem:[%s272 + $0x16] sm:$0x1] %vm723, %v776
        %792 = vst.msk [vmem:[%s272 + $0x1a] sm:$0x1] %vm723, %v777
        %793 = vst.msk [vmem:[%s272 + $0x1e] sm:$0x1] %vm723, %v778
        %s794 = scalar_lea.vmem [#allocation4], 24
        %v795 = vld [vmem:[%s794] sm:$0xff]
        %797 = vset.pattern.permute.xlu0 0
        %798 = vperm.xlu0 %797, %v700
        %v799 = vpop.permute.xlu0 %798
        %v801 = vmul.f32 %v795, %v799
        %v803 = vrot.slane %v801, 1
        %v804 = vrot.slane %v801, 2
        %v805 = vrot.slane %v801, 3
        %v806 = vrot.slane %v801, 4
        %v807 = vrot.slane %v801, 5
        %v808 = vrot.slane %v801, 6
        %v809 = vrot.slane %v801, 7
        %817 = vst.msk [vmem:[%s272 + $0x3] sm:$0x1] %vm723, %v801
        %818 = vst.msk [vmem:[%s272 + $0x7] sm:$0x1] %vm723, %v803
        %819 = vst.msk [vmem:[%s272 + $0xb] sm:$0x1] %vm723, %v804
        %820 = vst.msk [vmem:[%s272 + $0xf] sm:$0x1] %vm723, %v805
        %821 = vst.msk [vmem:[%s272 + $0x13] sm:$0x1] %vm723, %v806
        %822 = vst.msk [vmem:[%s272 + $0x17] sm:$0x1] %vm723, %v807
        %823 = vst.msk [vmem:[%s272 + $0x1b] sm:$0x1] %vm723, %v808
        %824 = vst.msk [vmem:[%s272 + $0x1f] sm:$0x1] %vm723, %v809
      $region40: #{multi_head_attention.1} parent=31 // pred_fallthru
        _
      %s825 = smul.u32 8, %s20
      %p826 = scmp.lt.s32.totalorder %s19, 1
      %s827 = scalar_select %p826, %s19, 1
      %p828 = scmp.lt.s32.totalorder %s825, 7
      %s829 = scalar_select %p828, %s825, 7
      %s830 = smul.addr %s827, 8
      %s831 = sadd.s32 %s829, %s830
      %s832 = smul.addr %s831, 4
      %s833 = scalar_lea.vmem %s3, %s832
      // Predicated region
      $region41: #{multi_head_attention.1} parent=31 // pred_check
        %p834 = pneg %p137
      $region42: #{multi_head_attention.1} parent=31 // pred_check_branch
        %836 = sbr.rel (%p834) target = $region44
      $region43: #{multi_head_attention.1} parent=31 // pred_region
        %s837 = smul.u32 8, %s20
      $region44: #{multi_head_attention.1} parent=31 // pred_fallthru
        _
    $region32: #{multi_head_attention.1} parent=5 // pred_fallthru
      _
    %p838 = scmp.le.s32.totalorder 2, %s9
    // Predicated region
    $region45: #{multi_head_attention.1} parent=5 // pred_check
      %p839 = pneg %p838
    $region46: #{multi_head_attention.1} parent=5 // pred_check_branch
      %841 = sbr.rel (%p839) target = $region48
    $region47: #{multi_head_attention.1} parent=5 // pred_region
      %s842 = ssub.s32 %s9, 2
      // Predicated region
      $region49: #{multi_head_attention.1} parent=47 // pred_check
        %p843 = pneg %p143
      $region50: #{multi_head_attention.1} parent=47 // pred_check_branch
        %845 = sbr.rel (%p843) target = $region52
      $region51: #{multi_head_attention.1} parent=47 // pred_region
        %s846 = smul.u32 8, %s23
        %p847 = scmp.lt.s32.totalorder %s22, 1
        %s848 = scalar_select %p847, %s22, 1
        %p849 = scmp.lt.s32.totalorder %s846, 7
        %s850 = scalar_select %p849, %s846, 7
        %s851 = smul.addr %s848, 8
        %s852 = sadd.s32 %s850, %s851
        %s853 = smul.addr %s852, 4
        %s854 = scalar_lea.vmem %s3, %s853
      $region52: #{multi_head_attention.1} parent=47 // pred_fallthru
        _
    $region48: #{multi_head_attention.1} parent=5 // pred_fallthru
      _
  $region6: #{multi_head_attention.1} parent=0 // loop_footer
    %s13 = sadd.s32 1, %s9
  $region7: #{multi_head_attention.1} parent=0 // loop_footer_branch
    %8 = sbr.rel target = $region3
  $region8: #{multi_head_attention.1} parent=0 // loop_exit
    _

</llo_original>
